<compile_context>
chip_gen: v5e
topology: v5e:2x2
jax: 0.10.0
libtpu: 0.0.40
codegen_flags: <defaults>
</compile_context>

<pallas_src>
import functools

import jax
import jax.numpy as jnp
from jax import lax
from jax.experimental import pallas as pl
from jax.experimental.pallas import tpu as pltpu

LANES = 128
SUBLANES = 8


def _round_up(n, m):
    return (n + m - 1) // m * m


def _vmem_budget_and_limit():
    """Generation-aware VMEM planning budget + scoped limit."""
    try:
        cap = int(pltpu.get_tpu_info().vmem_capacity_bytes)
    except Exception:
        cap = 64 * 1024 * 1024  # conservative fallback: assume v7x-sized VMEM
    # Scoped limit: leave headroom for compiler-internal scratch.
    limit = max(32 * 1024 * 1024, min(cap - 16 * 1024 * 1024, 100 * 1024 * 1024))
    budget = int(limit * 0.75)  # what _choose_batch_tile plans against
    return budget, limit


def _choose_batch_tile(B, D, C_pad, budget_bytes):
    """Largest batch tile whose working set fits the VMEM budget.

    Accounting (all f32):
      * resident centroid data (c_t + c_sq), double-buffered by the pipeline
      * x / y input tiles, double-buffered
      * ~5 live (TB, C_pad) intermediates + a few (TB, 1) columns (single copy)
      * the (1, 8, 128) output block, double-buffered
    """
    resident = 2 * 4 * (D * C_pad + C_pad)
    out_bytes = 2 * 4 * SUBLANES * LANES
    tb = SUBLANES
    for cand in (2048, 1024, 512, 256, 128, 64, 32, 16, 8):
        io = 2 * 4 * (cand * D + cand)
        interm = 4 * (5 * cand * C_pad + 4 * cand)
        if resident + io + interm + out_bytes <= budget_bytes:
            tb = cand
            break
    # Never tile past the (8-aligned) batch.
    tb = min(tb, _round_up(B, SUBLANES))
    # Keep padded-row waste below ~12.5% of the real batch.
    while tb > SUBLANES and (_round_up(B, tb) - B) * 8 > B:
        tb = max(SUBLANES, (tb // 2) // SUBLANES * SUBLANES)
    # Prefer >=2 grid steps so the "parallel" batch axis can use both
    # TensorCores on v7x (megacore).
    if tb > SUBLANES and _round_up(B, tb) // tb < 2:
        half = max(SUBLANES, ((tb // 2) + SUBLANES - 1) // SUBLANES * SUBLANES)
        if _round_up(B, half) // half >= 2:
            tb = half
    return tb


def l2_kernel(x_ref, ct_ref, csq_ref, y_ref, out_ref, *, num_rows, dot_dtype):
    i = pl.program_id(0)

    x = x_ref[...]        # (TB, D)     f32   batch tile
    c_t = ct_ref[...]     # (D, C_pad)  f32   = (2 * centroids)^T, VMEM-resident
    c_sq = csq_ref[...]   # (1, C_pad)  f32   = ||c||^2 (huge sentinel on padding)
    y = y_ref[...]        # (TB, 1)     i32

    tb = x.shape[0]
    cp = c_t.shape[1]

    # Distances up to a per-row constant (softmax / argmax invariant):
    #   d'_ij = 2 x_i . c_j - ||c_j||^2  (= -||x_i - c_j||^2 + ||x_i||^2)
    # The 2x scale is folded into c_t and padded classes carry a huge ||c||^2
    # sentinel, so dist is a single MXU dot + one subtract over (TB, C_pad).
    precision = (lax.Precision.HIGHEST
                 if jnp.dtype(dot_dtype) == jnp.dtype(jnp.float32) else None)
    xc = jnp.dot(x.astype(dot_dtype), c_t.astype(dot_dtype),
                 preferred_element_type=jnp.float32, precision=precision)
    dist = xc - c_sq                                               # (TB, C_pad)

    class_iota = lax.broadcasted_iota(jnp.int32, (tb, cp), 1)

    # argmax over classes (first maximum index, matching torch.argmax tie-break).
    max_v = jnp.max(dist, axis=-1, keepdims=True)                  # (TB, 1)
    decisions = jnp.min(jnp.where(dist == max_v, class_iota, cp),
                        axis=-1, keepdims=True)                    # (TB, 1) i32

    # dist[row, y[row]] via iota compare (no f32 one-hot multiply).
    dist_at_y = jnp.max(jnp.where(class_iota == y, dist, -jnp.inf),
                        axis=-1, keepdims=True)                    # (TB, 1)

    # Cross entropy per row: logsumexp(dist) - dist[y].
    lse = max_v + jnp.log(jnp.sum(jnp.exp(dist - max_v), axis=-1,
                                  keepdims=True))                  # (TB, 1)

    # Mask batch-padding rows out of this tile's partial sums.
    row_ids = i * tb + lax.broadcasted_iota(jnp.int32, (tb, 1), 0)
    row_valid = row_ids < num_rows

    loss_sum = jnp.sum(jnp.where(row_valid, lse - dist_at_y, 0.0))
    # NOTE: f32 count is exact up to 2^24 rows; fine for any realistic batch.
    corr_sum = jnp.sum(jnp.where(row_valid & (decisions == y), 1.0, 0.0))

    # Single dense (8, 128) output block per tile:
    #   sublane 0 = loss partial, sublane 1 = correct-count partial.
    sub = lax.broadcasted_iota(jnp.int32, (1, SUBLANES, LANES), 1)
    out_ref[...] = (jnp.where(sub == 0, loss_sum, 0.0)
                    + jnp.where(sub == 1, corr_sum, 0.0))


def l2_forward(x, centroids, y, *, dot_dtype=jnp.float32):
    """x: (B, D), centroids: (C, D), y: (B,) int -> (loss, score) f32 scalars."""
    B, D = x.shape
    C, _ = centroids.shape

    C_pad = _round_up(C, LANES)
    budget, vmem_limit = _vmem_budget_and_limit()
    TB = _choose_batch_tile(B, D, C_pad, budget)
    B_pad = _round_up(B, TB)
    num_tiles = B_pad // TB

    x32 = x.astype(jnp.float32)
    c32 = centroids.astype(jnp.float32)

    # Pad batch rows (masked in-kernel via row_valid) and classes.
    x_p = jnp.zeros((B_pad, D), jnp.float32).at[:B].set(x32)
    y_p = jnp.zeros((B_pad, 1), jnp.int32).at[:B, 0].set(y.astype(jnp.int32))
    c_pad = jnp.zeros((C_pad, D), jnp.float32).at[:C].set(c32)

    # Hoisted centroid-side work, done once on the wrapper side:
    #   c_t  = (2 * c)^T   so the kernel's dist is a single xc - c_sq
    #   c_sq = ||c||^2 with a large finite sentinel on padded classes so they
    #          never win the max and contribute exp(-huge) = 0 to the softmax.
    c_t = (2.0 * c_pad).T                                            # (D, C_pad)
    c_sq_valid = jnp.sum(c_pad * c_pad, axis=-1)                     # (C_pad,)
    class_mask = jnp.arange(C_pad) < C
    c_sq = jnp.where(class_mask, c_sq_valid, 1e30)[None, :]          # (1, C_pad)

    kernel = functools.partial(l2_kernel, num_rows=B, dot_dtype=dot_dtype)

    partials = pl.pallas_call(
        kernel,
        grid=(num_tiles,),
        out_shape=jax.ShapeDtypeStruct((num_tiles, SUBLANES, LANES), jnp.float32),
        in_specs=[
            pl.BlockSpec((TB, D), lambda i: (i, 0)),       # x: per-batch-tile
            pl.BlockSpec((D, C_pad), lambda i: (0, 0)),    # (2c)^T: resident
            pl.BlockSpec((1, C_pad), lambda i: (0, 0)),    # ||c||^2: resident
            pl.BlockSpec((TB, 1), lambda i: (i, 0)),       # y: per-batch-tile
        ],
        out_specs=pl.BlockSpec((1, SUBLANES, LANES), lambda i: (i, 0, 0)),
        compiler_params=pltpu.CompilerParams(
            dimension_semantics=("parallel",),             # megacore when >=2 tiles
            vmem_limit_bytes=int(vmem_limit),
        ),
    )(x_p, c_t, c_sq, y_p)

    # Tiny wrapper-side reduction over the per-tile partials + divide by true B.
    loss = jnp.sum(partials[:, 0, 0]) / B
    score = jnp.sum(partials[:, 1, 0]) / B
    return loss, score


def l2_reference(x, centroids, y):
    diff = x[:, None, :] - centroids[None, :, :]
    dist = -jnp.sum(diff * diff, axis=-1)                            # (B, C)
    decisions = jnp.argmax(dist, axis=1)
    score = jnp.mean((decisions == y).astype(jnp.float32))
    logp = jax.nn.log_softmax(dist, axis=-1)
    loss = -jnp.mean(logp[jnp.arange(x.shape[0]), y])
    return loss, score


if __name__ == "__main__":
    B, D, C = 8, 32, 5   # batch, inputDim, numClasses

    key = jax.random.PRNGKey(0)
    kx, kc, ky = jax.random.split(key, 3)
    x = jax.random.normal(kx, (B, D), dtype=jnp.float32)
    # module __init__ uses zeros; use a deterministic non-degenerate init instead
    centroids = 0.1 * jax.random.normal(kc, (C, D), dtype=jnp.float32)
    y = jax.random.randint(ky, (B,), 0, C, dtype=jnp.int32)

    loss, score = jax.block_until_ready(l2_forward(x, centroids, y))
    ref_loss, ref_score = l2_reference(x, centroids, y)

    assert jnp.allclose(loss, ref_loss, rtol=1e-4, atol=1e-4), (loss, ref_loss)
    assert jnp.allclose(score, ref_score, rtol=1e-5, atol=1e-5), (score, ref_score)

    print("KERNEL_OK")
</pallas_src>

<mosaic_0001>
module attributes {stable_mosaic.version = 11 : i64} {
  func.func @l2_kernel(%arg0: i32, %arg1: memref<8x32xf32, #tpu.memory_space<vmem>>, %arg2: memref<32x128xf32, #tpu.memory_space<vmem>>, %arg3: memref<1x128xf32, #tpu.memory_space<vmem>>, %arg4: memref<8x1xi32, #tpu.memory_space<vmem>>, %arg5: memref<1x8x128xf32, #tpu.memory_space<vmem>>) attributes {dimension_semantics = [#tpu.dimension_semantics<parallel>], iteration_bounds = array<i64: 1>, scalar_prefetch = 0 : i64, scratch_operands = 0 : i64, tpu.core_type = #tpu.core_type<tc>, window_params = [{transform_indices = @transform_0, window_bounds = array<i64: 8, 32>}, {pipeline_mode = #tpu.pipeline_mode<synchronous>, transform_indices = @transform_1, window_bounds = array<i64: 32, 128>}, {pipeline_mode = #tpu.pipeline_mode<synchronous>, transform_indices = @transform_2, window_bounds = array<i64: 1, 128>}, {transform_indices = @transform_3, window_bounds = array<i64: 8, 1>}, {transform_indices = @transform_4, window_bounds = array<i64: 1, 8, 128>}]} {
    %c0 = arith.constant 0 : index
    %c0_0 = arith.constant 0 : index
    %0 = vector.load %arg1[%c0, %c0_0] : memref<8x32xf32, #tpu.memory_space<vmem>>, vector<8x32xf32>
    %c0_1 = arith.constant 0 : index
    %c0_2 = arith.constant 0 : index
    %1 = vector.load %arg2[%c0_1, %c0_2] : memref<32x128xf32, #tpu.memory_space<vmem>>, vector<32x128xf32>
    %c0_3 = arith.constant 0 : index
    %c0_4 = arith.constant 0 : index
    %2 = vector.load %arg3[%c0_3, %c0_4] : memref<1x128xf32, #tpu.memory_space<vmem>>, vector<1x128xf32>
    %c0_5 = arith.constant 0 : index
    %c0_6 = arith.constant 0 : index
    %3 = vector.load %arg4[%c0_5, %c0_6] : memref<8x1xi32, #tpu.memory_space<vmem>>, vector<8x1xi32>
    %cst = arith.constant dense<0.000000e+00> : vector<8x128xf32>
    %4 = tpu.matmul %0, %1, %cst {dimension_numbers = #tpu.dot_dimension_numbers<[1], [0], [0], [1], [0, 0, 1, 1], [], []>, precision = #tpu.contract_precision<fp32>} : vector<8x32xf32>, vector<32x128xf32>, vector<8x128xf32> -> vector<8x128xf32>
    %5 = vector.broadcast %2 : vector<1x128xf32> to vector<8x128xf32>
    %6 = arith.subf %4, %5 : vector<8x128xf32>
    %7 = tpu.iota {dimensions = array<i32: 1>} : vector<8x128xi32>
    %cst_7 = arith.constant dense<0xFF800000> : vector<8xf32>
    %8 = vector.multi_reduction <maximumf>, %6, %cst_7 [1] : vector<8x128xf32> to vector<8xf32>
    %9 = vector.shape_cast %8 : vector<8xf32> to vector<8x1xf32>
    %10 = vector.broadcast %9 : vector<8x1xf32> to vector<8x128xf32>
    %11 = arith.cmpf oeq, %6, %10 : vector<8x128xf32>
    %c128_i32 = arith.constant 128 : i32
    %12 = vector.broadcast %c128_i32 : i32 to vector<8x128xi32>
    %13 = arith.select %11, %7, %12 : vector<8x128xi1>, vector<8x128xi32>
    %cst_8 = arith.constant dense<2147483647> : vector<8xi32>
    %14 = vector.multi_reduction <minsi>, %13, %cst_8 [1] : vector<8x128xi32> to vector<8xi32>
    %15 = vector.shape_cast %14 : vector<8xi32> to vector<8x1xi32>
    %16 = vector.broadcast %3 : vector<8x1xi32> to vector<8x128xi32>
    %17 = arith.cmpi eq, %7, %16 : vector<8x128xi32>
    %cst_9 = arith.constant 0xFF800000 : f32
    %18 = vector.broadcast %cst_9 : f32 to vector<8x128xf32>
    %19 = arith.select %17, %6, %18 : vector<8x128xi1>, vector<8x128xf32>
    %cst_10 = arith.constant dense<0xFF800000> : vector<8xf32>
    %20 = vector.multi_reduction <maximumf>, %19, %cst_10 [1] : vector<8x128xf32> to vector<8xf32>
    %21 = vector.shape_cast %20 : vector<8xf32> to vector<8x1xf32>
    %22 = vector.broadcast %9 : vector<8x1xf32> to vector<8x128xf32>
    %23 = arith.subf %6, %22 : vector<8x128xf32>
    %24 = math.exp %23 : vector<8x128xf32>
    %cst_11 = arith.constant dense<0.000000e+00> : vector<8xf32>
    %25 = vector.multi_reduction <add>, %24, %cst_11 [1] : vector<8x128xf32> to vector<8xf32>
    %26 = vector.shape_cast %25 : vector<8xf32> to vector<8x1xf32>
    %27 = math.log %26 : vector<8x1xf32>
    %28 = arith.addf %9, %27 : vector<8x1xf32>
    %c8_i32 = arith.constant 8 : i32
    %29 = arith.muli %arg0, %c8_i32 : i32
    %30 = tpu.iota {dimensions = array<i32: 0>} : vector<8x1xi32>
    %31 = vector.broadcast %29 : i32 to vector<8x1xi32>
    %32 = arith.addi %31, %30 : vector<8x1xi32>
    %c8_i32_12 = arith.constant 8 : i32
    %33 = vector.broadcast %c8_i32_12 : i32 to vector<8x1xi32>
    %34 = arith.cmpi slt, %32, %33 : vector<8x1xi32>
    %35 = arith.subf %28, %21 : vector<8x1xf32>
    %cst_13 = arith.constant 0.000000e+00 : f32
    %36 = vector.broadcast %cst_13 : f32 to vector<8x1xf32>
    %37 = arith.select %34, %35, %36 : vector<8x1xi1>, vector<8x1xf32>
    %38 = vector.shape_cast %37 : vector<8x1xf32> to vector<1x8x1xf32>
    %cst_14 = arith.constant dense<0.000000e+00> : vector<1xf32>
    %39 = vector.multi_reduction <add>, %38, %cst_14 [1, 2] : vector<1x8x1xf32> to vector<1xf32>
    %40 = vector.shape_cast %39 : vector<1xf32> to vector<1x1x1xf32>
    %41 = vector.extract %40[0, 0, 0] : f32 from vector<1x1x1xf32>
    %42 = arith.cmpi eq, %15, %3 : vector<8x1xi32>
    %43 = arith.andi %34, %42 : vector<8x1xi1>
    %cst_15 = arith.constant 1.000000e+00 : f32
    %cst_16 = arith.constant 0.000000e+00 : f32
    %44 = vector.broadcast %cst_15 : f32 to vector<8x1xf32>
    %45 = vector.broadcast %cst_16 : f32 to vector<8x1xf32>
    %46 = arith.select %43, %44, %45 : vector<8x1xi1>, vector<8x1xf32>
    %47 = vector.shape_cast %46 : vector<8x1xf32> to vector<1x8x1xf32>
    %cst_17 = arith.constant dense<0.000000e+00> : vector<1xf32>
    %48 = vector.multi_reduction <add>, %47, %cst_17 [1, 2] : vector<1x8x1xf32> to vector<1xf32>
    %49 = vector.shape_cast %48 : vector<1xf32> to vector<1x1x1xf32>
    %50 = vector.extract %49[0, 0, 0] : f32 from vector<1x1x1xf32>
    %51 = tpu.iota {dimensions = array<i32: 1>} : vector<1x8x128xi32>
    %c0_i32 = arith.constant 0 : i32
    %52 = vector.broadcast %c0_i32 : i32 to vector<1x8x128xi32>
    %53 = arith.cmpi eq, %51, %52 : vector<1x8x128xi32>
    %cst_18 = arith.constant 0.000000e+00 : f32
    %54 = vector.broadcast %41 : f32 to vector<1x8x128xf32>
    %55 = vector.broadcast %cst_18 : f32 to vector<1x8x128xf32>
    %56 = arith.select %53, %54, %55 : vector<1x8x128xi1>, vector<1x8x128xf32>
    %c1_i32 = arith.constant 1 : i32
    %57 = vector.broadcast %c1_i32 : i32 to vector<1x8x128xi32>
    %58 = arith.cmpi eq, %51, %57 : vector<1x8x128xi32>
    %cst_19 = arith.constant 0.000000e+00 : f32
    %59 = vector.broadcast %50 : f32 to vector<1x8x128xf32>
    %60 = vector.broadcast %cst_19 : f32 to vector<1x8x128xf32>
    %61 = arith.select %58, %59, %60 : vector<1x8x128xi1>, vector<1x8x128xf32>
    %62 = arith.addf %56, %61 : vector<1x8x128xf32>
    %c0_20 = arith.constant 0 : index
    %c0_21 = arith.constant 0 : index
    %c0_22 = arith.constant 0 : index
    %63 = vector.load %arg5[%c0_20, %c0_21, %c0_22] : memref<1x8x128xf32, #tpu.memory_space<vmem>>, vector<1x8x128xf32>
    tpu.vector_store %arg5[%c0_20, %c0_21, %c0_22], %62 {strides = array<i32>} : memref<1x8x128xf32, #tpu.memory_space<vmem>>, vector<1x8x128xf32>,
    return
  }
  func.func @transform_0(%arg0: i32) -> (i32, i32) {
    %c0_i32 = arith.constant 0 : i32
    %c0_i32_0 = arith.constant 0 : i32
    return %arg0, %c0_i32 : i32, i32
  }
  func.func @transform_1(%arg0: i32) -> (i32, i32) {
    %c0_i32 = arith.constant 0 : i32
    %c0_i32_0 = arith.constant 0 : i32
    %c0_i32_1 = arith.constant 0 : i32
    return %c0_i32, %c0_i32_0 : i32, i32
  }
  func.func @transform_2(%arg0: i32) -> (i32, i32) {
    %c0_i32 = arith.constant 0 : i32
    %c0_i32_0 = arith.constant 0 : i32
    %c0_i32_1 = arith.constant 0 : i32
    return %c0_i32, %c0_i32_0 : i32, i32
  }
  func.func @transform_3(%arg0: i32) -> (i32, i32) {
    %c0_i32 = arith.constant 0 : i32
    %c0_i32_0 = arith.constant 0 : i32
    return %arg0, %c0_i32 : i32, i32
  }
  func.func @transform_4(%arg0: i32) -> (i32, i32, i32) {
    %c0_i32 = arith.constant 0 : i32
    %c0_i32_0 = arith.constant 0 : i32
    %c0_i32_1 = arith.constant 0 : i32
    return %arg0, %c0_i32, %c0_i32_0 : i32, i32, i32
  }
}

</mosaic_0001>

<llo_original>
// kernel: tpu_custom_call.1
$region0: #{tpu_custom_call.1}
  #allocation0 [shape = 'u32[]', space=smem, size = 0x4, offset = 0x4, fixed_abs, tag = 'smem constant byte address 0x4 - core index']
  #allocation1 [shape = 'u32[72,128]{1,0:T(1,128)}', space=vmem, size = 0x9000, scoped, tag = 'internal scratch']
  %s0 = inlined_call_operand.vmem [shape: f32[8,32], index: 0, kind: input, shape index: {}]
  %s1 = inlined_call_operand.hbm [shape: f32[32,128], index: 1, kind: input, shape index: {}]
  %s2 = inlined_call_operand.vmem [shape: f32[1,128], index: 2, kind: input, shape index: {}]
  %s3 = inlined_call_operand.vmem [shape: s32[8,1], index: 3, kind: input, shape index: {}]
  %s4 = inlined_call_operand.hbm [shape: f32[1,8,128], index: 4, kind: output, shape index: {}]
  %s5 = sld [smem:[#allocation0]]
  $region30: #{tpu_custom_call.1} parent=0
    _
  %s7 = ssub.s32 1, %s5
  %s8 = scalar_select 0, %s7, %s5
  $region1: #{tpu_custom_call.1} parent=0
    #allocation2 [shape = 'u8[16384]{0}', space=vmem, size = 0x4000, scoped, tag = 'input window, operand 1, single buffered']
    #allocation3 [shape = 's32[1]{0}', space=sflag, size = 0x4, scoped, tag = 'scoped memory for tpu_custom_call.1']
    #allocation4 [shape = 's32[1]{0}', space=sflag, size = 0x4, scoped, tag = 'scoped memory for tpu_custom_call.1']
    #allocation5 [shape = 'u8[4096]{0}', space=vmem, size = 0x1000, scoped, tag = 'output window, operand 0, single buffered']
    %9 = vsyncpa [#allocation3], 0
    %10 = vsyncpa [#allocation4], 0
    // Predicated region
    $region2: #{tpu_custom_call.1} parent=1 // pred_check
      _
    $region3: #{tpu_custom_call.1} parent=1 // pred_check_branch
      %12 = sbr.rel (0) target = $region5
    $region4: #{tpu_custom_call.1} parent=1 // pred_region
      _
    $region5: #{tpu_custom_call.1} parent=1 // pred_fallthru
      _
    // Predicated region
    $region6: #{tpu_custom_call.1} parent=1 // pred_check
      _
    $region7: #{tpu_custom_call.1} parent=1 // pred_check_branch
      %14 = sbr.rel (0) target = $region9
    $region8: #{tpu_custom_call.1} parent=1 // pred_region
      %16 = vsyncadd [#allocation3], 0
      %s17 = sshll.u32 %s1, 4
      %s18 = int_to_ptr.hbm [resolvable:$true] %s17
      %s19 = sshll.u32 [#allocation2], 4
      %s20 = int_to_ptr.vmem [resolvable:$true] %s19
      %25 = dma.hbm_to_vmem [thread:$0]  %s18, 512, %s20, [#allocation3], 128, 128, 8
    $region9: #{tpu_custom_call.1} parent=1 // pred_fallthru
      _
    // Predicated region
    $region10: #{tpu_custom_call.1} parent=1 // pred_check
      _
    $region11: #{tpu_custom_call.1} parent=1 // pred_check_branch
      %27 = sbr.rel (0) target = $region13
    $region12: #{tpu_custom_call.1} parent=1 // pred_region
      _
    $region13: #{tpu_custom_call.1} parent=1 // pred_fallthru
      _
    // Predicated region
    $region14: #{tpu_custom_call.1} parent=1 // pred_check
      _
    $region15: #{tpu_custom_call.1} parent=1 // pred_check_branch
      %29 = sbr.rel (0) target = $region17
    $region16: #{tpu_custom_call.1} parent=1 // pred_region
      _
    $region17: #{tpu_custom_call.1} parent=1 // pred_fallthru
      _
    // Predicated region
    $region18: #{tpu_custom_call.1} parent=1 // pred_check
      _
    $region19: #{tpu_custom_call.1} parent=1 // pred_check_branch
      %31 = sbr.rel (0) target = $region21
    $region20: #{tpu_custom_call.1} parent=1 // pred_region
      %33 = dma.done [#allocation3], 512
    $region21: #{tpu_custom_call.1} parent=1 // pred_fallthru
      _
    %v34 = vld [vmem:[%s0] sm:$0xff]
    %v35 = vld [vmem:[#allocation2] sm:$0xff]
    %v36 = vld [vmem:[#allocation2 + $0x8] sm:$0xff]
    %v37 = vld [vmem:[#allocation2 + $0x10] sm:$0xff]
    %v38 = vld [vmem:[#allocation2 + $0x18] sm:$0xff]
    %v39 = vld [vmem:[%s2] sm:$0x1]
    %v40 = vld [vmem:[%s3] sm:$0xff]
    %vm41 = vcmask 261120
    %v43 = vsel %vm41, %v34, 0
    %45 = vmatpush.msra.mxu0 0.0
    %46 = vmatpush.msra.mxu0 0.0
    %47 = vmatpush.msra.mxu0 0.0
    %48 = vmatpush.msra.mxu0 0.0
    %49 = vmatpush.msra.mxu0 0.0
    %50 = vmatpush.msra.mxu0 0.0
    %51 = vmatpush.msra.mxu0 0.0
    %52 = vmatpush.msra.mxu0 0.0
    %53 = vmatpush.msra.mxu0 0.0
    %54 = vmatpush.msra.mxu0 0.0
    %55 = vmatpush.msra.mxu0 0.0
    %56 = vmatpush.msra.mxu0 0.0
    %v57 = vand.u32 %v38, 4294901760
    %58 = vmatpush.msra.mxu0 %v57
    %v59 = vand.u32 %v37, 4294901760
    %60 = vmatpush.msra.mxu0 %v59
    %v61 = vand.u32 %v36, 4294901760
    %62 = vmatpush.msra.mxu0 %v61
    %v63 = vand.u32 %v35, 4294901760
    %64 = vmatpush.msra.mxu0 %v63
    %v65 = vand.u32 %v43, 4294901760
    %v66 = vsub.f32 %v43, %v65
    %v67 = vand.u32 %v66, 4294901760
    %v68 = vsub.f32 %v66, %v67
    %v69 = vand.u32 %v68, 4294901760
    %70 = vmatmul.f32.gmra.mxu0 %v69
    %v71 = vpop.f32.mrf.mxu0
    %v72 = vadd.f32 0.0, %v71
    %73 = vdwg.mxu0
    %74 = vmatpush.msra.mxu0 0.0
    %75 = vmatpush.msra.mxu0 0.0
    %76 = vmatpush.msra.mxu0 0.0
    %77 = vmatpush.msra.mxu0 0.0
    %78 = vmatpush.msra.mxu0 0.0
    %79 = vmatpush.msra.mxu0 0.0
    %80 = vmatpush.msra.mxu0 0.0
    %81 = vmatpush.msra.mxu0 0.0
    %82 = vmatpush.msra.mxu0 0.0
    %83 = vmatpush.msra.mxu0 0.0
    %84 = vmatpush.msra.mxu0 0.0
    %85 = vmatpush.msra.mxu0 0.0
    %v86 = vand.u32 %v38, 4294901760
    %v87 = vsub.f32 %v38, %v86
    %v88 = vand.u32 %v87, 4294901760
    %v89 = vsub.f32 %v87, %v88
    %v90 = vand.u32 %v89, 4294901760
    %91 = vmatpush.msra.mxu0 %v90
    %v92 = vand.u32 %v37, 4294901760
    %v93 = vsub.f32 %v37, %v92
    %v94 = vand.u32 %v93, 4294901760
    %v95 = vsub.f32 %v93, %v94
    %v96 = vand.u32 %v95, 4294901760
    %97 = vmatpush.msra.mxu0 %v96
    %v98 = vand.u32 %v36, 4294901760
    %v99 = vsub.f32 %v36, %v98
    %v100 = vand.u32 %v99, 4294901760
    %v101 = vsub.f32 %v99, %v100
    %v102 = vand.u32 %v101, 4294901760
    %103 = vmatpush.msra.mxu0 %v102
    %v104 = vand.u32 %v35, 4294901760
    %v105 = vsub.f32 %v35, %v104
    %v106 = vand.u32 %v105, 4294901760
    %v107 = vsub.f32 %v105, %v106
    %v108 = vand.u32 %v107, 4294901760
    %109 = vmatpush.msra.mxu0 %v108
    %v110 = vand.u32 %v43, 4294901760
    %111 = vmatmul.f32.gmra.mxu0 %v110
    %v112 = vpop.f32.mrf.mxu0
    %v113 = vadd.f32 %v72, %v112
    %114 = vdwg.mxu0
    %115 = vmatpush.msra.mxu0 0.0
    %116 = vmatpush.msra.mxu0 0.0
    %117 = vmatpush.msra.mxu0 0.0
    %118 = vmatpush.msra.mxu0 0.0
    %119 = vmatpush.msra.mxu0 0.0
    %120 = vmatpush.msra.mxu0 0.0
    %121 = vmatpush.msra.mxu0 0.0
    %122 = vmatpush.msra.mxu0 0.0
    %123 = vmatpush.msra.mxu0 0.0
    %124 = vmatpush.msra.mxu0 0.0
    %125 = vmatpush.msra.mxu0 0.0
    %126 = vmatpush.msra.mxu0 0.0
    %v127 = vand.u32 %v38, 4294901760
    %v128 = vsub.f32 %v38, %v127
    %129 = vmatpush.msra.mxu0 %v128
    %v130 = vand.u32 %v37, 4294901760
    %v131 = vsub.f32 %v37, %v130
    %132 = vmatpush.msra.mxu0 %v131
    %v133 = vand.u32 %v36, 4294901760
    %v134 = vsub.f32 %v36, %v133
    %135 = vmatpush.msra.mxu0 %v134
    %v136 = vand.u32 %v35, 4294901760
    %v137 = vsub.f32 %v35, %v136
    %138 = vmatpush.msra.mxu0 %v137
    %v139 = vand.u32 %v43, 4294901760
    %v140 = vsub.f32 %v43, %v139
    %141 = vmatmul.f32.gmra.mxu0 %v140
    %v142 = vpop.f32.mrf.mxu0
    %v143 = vadd.f32 %v113, %v142
    %144 = vdwg.mxu0
    %145 = vmatpush.msra.mxu0 0.0
    %146 = vmatpush.msra.mxu0 0.0
    %147 = vmatpush.msra.mxu0 0.0
    %148 = vmatpush.msra.mxu0 0.0
    %149 = vmatpush.msra.mxu0 0.0
    %150 = vmatpush.msra.mxu0 0.0
    %151 = vmatpush.msra.mxu0 0.0
    %152 = vmatpush.msra.mxu0 0.0
    %153 = vmatpush.msra.mxu0 0.0
    %154 = vmatpush.msra.mxu0 0.0
    %155 = vmatpush.msra.mxu0 0.0
    %156 = vmatpush.msra.mxu0 0.0
    %v157 = vand.u32 %v38, 4294901760
    %158 = vmatpush.msra.mxu0 %v157
    %v159 = vand.u32 %v37, 4294901760
    %160 = vmatpush.msra.mxu0 %v159
    %v161 = vand.u32 %v36, 4294901760
    %162 = vmatpush.msra.mxu0 %v161
    %v163 = vand.u32 %v35, 4294901760
    %164 = vmatpush.msra.mxu0 %v163
    %v165 = vand.u32 %v43, 4294901760
    %v166 = vsub.f32 %v43, %v165
    %v167 = vand.u32 %v166, 4294901760
    %168 = vmatmul.f32.gmra.mxu0 %v167
    %v169 = vpop.f32.mrf.mxu0
    %v170 = vadd.f32 %v143, %v169
    %171 = vdwg.mxu0
    %172 = vmatpush.msra.mxu0 0.0
    %173 = vmatpush.msra.mxu0 0.0
    %174 = vmatpush.msra.mxu0 0.0
    %175 = vmatpush.msra.mxu0 0.0
    %176 = vmatpush.msra.mxu0 0.0
    %177 = vmatpush.msra.mxu0 0.0
    %178 = vmatpush.msra.mxu0 0.0
    %179 = vmatpush.msra.mxu0 0.0
    %180 = vmatpush.msra.mxu0 0.0
    %181 = vmatpush.msra.mxu0 0.0
    %182 = vmatpush.msra.mxu0 0.0
    %183 = vmatpush.msra.mxu0 0.0
    %v184 = vand.u32 %v38, 4294901760
    %v185 = vsub.f32 %v38, %v184
    %v186 = vand.u32 %v185, 4294901760
    %187 = vmatpush.msra.mxu0 %v186
    %v188 = vand.u32 %v37, 4294901760
    %v189 = vsub.f32 %v37, %v188
    %v190 = vand.u32 %v189, 4294901760
    %191 = vmatpush.msra.mxu0 %v190
    %v192 = vand.u32 %v36, 4294901760
    %v193 = vsub.f32 %v36, %v192
    %v194 = vand.u32 %v193, 4294901760
    %195 = vmatpush.msra.mxu0 %v194
    %v196 = vand.u32 %v35, 4294901760
    %v197 = vsub.f32 %v35, %v196
    %v198 = vand.u32 %v197, 4294901760
    %199 = vmatpush.msra.mxu0 %v198
    %v200 = vand.u32 %v43, 4294901760
    %201 = vmatmul.f32.gmra.mxu0 %v200
    %v202 = vpop.f32.mrf.mxu0
    %v203 = vadd.f32 %v170, %v202
    %204 = vdwg.mxu0
    %205 = vmatpush.msra.mxu0 0.0
    %206 = vmatpush.msra.mxu0 0.0
    %207 = vmatpush.msra.mxu0 0.0
    %208 = vmatpush.msra.mxu0 0.0
    %209 = vmatpush.msra.mxu0 0.0
    %210 = vmatpush.msra.mxu0 0.0
    %211 = vmatpush.msra.mxu0 0.0
    %212 = vmatpush.msra.mxu0 0.0
    %213 = vmatpush.msra.mxu0 0.0
    %214 = vmatpush.msra.mxu0 0.0
    %215 = vmatpush.msra.mxu0 0.0
    %216 = vmatpush.msra.mxu0 0.0
    %v217 = vand.u32 %v38, 4294901760
    %218 = vmatpush.msra.mxu0 %v217
    %v219 = vand.u32 %v37, 4294901760
    %220 = vmatpush.msra.mxu0 %v219
    %v221 = vand.u32 %v36, 4294901760
    %222 = vmatpush.msra.mxu0 %v221
    %v223 = vand.u32 %v35, 4294901760
    %224 = vmatpush.msra.mxu0 %v223
    %v225 = vand.u32 %v43, 4294901760
    %226 = vmatmul.f32.gmra.mxu0 %v225
    %v227 = vpop.f32.mrf.mxu0
    %v228 = vadd.f32 %v203, %v227
    %229 = vdwg.mxu0
    %v231 = vperm.slane %v39, 0
    %v233 = vsub.f32 %v228, %v231
    %v234 = vlaneseq
    %v235 = vand.u32 %v234, 127
    %236 = vmax.xlane.f32.xlu0 %v233
    %v237 = vpop.xlane.xlu0 %236
    %vm238 = vcmp.eq.f32.partialorder %v233, %v237
    %v239 = vsel %vm238, %v235, 128
    %v240 = vand.u32 %v239, 65535
    %v241 = vshra.s32 %v239, 16
    %v242 = vcvt.s32.f32 %v240
    %v243 = vcvt.s32.f32 %v241
    %244 = vmin.xlane.f32.xlu0 %v243
    %v245 = vpop.xlane.xlu0 %244
    %vm246 = vcmp.eq.f32.partialorder %v243, %v245
    %v247 = vsel %vm246, %v242, inf
    %248 = vmin.xlane.f32.xlu0 %v247
    %v249 = vpop.xlane.xlu0 %248
    %v250 = vcvt.f32.s32 %v249
    %v251 = vcvt.f32.s32 %v245
    %v252 = vshll.u32 %v251, 16
    %v253 = vadd.s32 %v252, %v250
    %254 = vset.pattern.permute.xlu0 0
    %255 = vperm.xlu0 %254, %v40
    %v256 = vpop.permute.xlu0 %255
    %vm257 = vcmp.eq.s32.totalorder %v235, %v256
    %v258 = vsel %vm257, %v233, -inf
    %259 = vmax.xlane.f32.xlu0 %v258
    %v260 = vpop.xlane.xlu0 %259
    %v261 = vsub.f32 %v233, %v237
    %v262 = vmul.f32 %v261, 1.442695
    %v263 = vpow.pop %v262
    %264 = vadd.xlane.f32.xlu0 %v263
    %v265 = vpop.xlane.xlu0 %264
    %v266 = vlog2.pop %v265
    %v267 = vmul.f32 %v266, 0.6931472
    %v268 = vadd.f32 %v237, %v267
    %s269 = smul.u32 0, 8
    %v270 = vlaneseq
    %v271 = vshrl.u32 %v270, 7
    %v272 = vstv %s269
    %v273 = vadd.s32 %v272, %v271
    %vm274 = vcmp.lt.s32.totalorder %v273, 8
    %v275 = vsub.f32 %v268, %v260
    %v276 = vsel %vm274, %v275, 0.0
    %vm277 = vcmask 7168
    %v278 = vsel %vm277, %v276, 0.0
    %279 = vadd.xlane.f32.xlu0 %v278
    %v280 = vpop.xlane.xlu0 %279
    %v281 = vrot.slane %v280, 4
    %v282 = vadd.f32 %v280, %v281
    %v283 = vrot.slane %v282, 2
    %v284 = vadd.f32 %v282, %v283
    %v285 = vrot.slane %v284, 1
    %v286 = vadd.f32 %v284, %v285
    %s287 = vtos %v286
    %vm288 = vcmp.eq.s32.totalorder %v253, %v40
    %vm289 = vmand %vm274, %vm288
    %v290 = vsel %vm289, 1.0, 0.0
    %v291 = vsel %vm277, %v290, 0.0
    %292 = vadd.xlane.f32.xlu0 %v291
    %v293 = vpop.xlane.xlu0 %292
    %v294 = vrot.slane %v293, 4
    %v295 = vadd.f32 %v293, %v294
    %v296 = vrot.slane %v295, 2
    %v297 = vadd.f32 %v295, %v296
    %v298 = vrot.slane %v297, 1
    %v299 = vadd.f32 %v297, %v298
    %s300 = vtos %v299
    %vm301 = vcmp.eq.s32.totalorder %v271, 0
    %v302 = vstv %s287
    %v303 = vsel %vm301, %v302, 0.0
    %vm304 = vcmp.eq.s32.totalorder %v271, 1
    %v305 = vstv %s300
    %v306 = vsel %vm304, %v305, 0.0
    %v307 = vadd.f32 %v303, %v306
    %308 = vst [vmem:[#allocation5] sm:$0xff] %v307
    // Predicated region
    $region22: #{tpu_custom_call.1} parent=1 // pred_check
      _
    $region23: #{tpu_custom_call.1} parent=1 // pred_check_branch
      %310 = sbr.rel (0) target = $region25
    $region24: #{tpu_custom_call.1} parent=1 // pred_region
      %312 = vsyncadd [#allocation4], 0
      %s314 = sshll.u32 [#allocation5], 4
      %s315 = int_to_ptr.vmem [resolvable:$true] %s314
      %s316 = sshll.u32 %s4, 4
      %s317 = int_to_ptr.hbm [resolvable:$true] %s316
      %319 = dma.vmem_to_hbm [thread:$0]  %s315, 128, %s317, [#allocation4]
    $region25: #{tpu_custom_call.1} parent=1 // pred_fallthru
      _
    // Predicated region
    $region26: #{tpu_custom_call.1} parent=1 // pred_check
      _
    $region27: #{tpu_custom_call.1} parent=1 // pred_check_branch
      %321 = sbr.rel (0) target = $region29
    $region28: #{tpu_custom_call.1} parent=1 // pred_region
      %323 = dma.done [#allocation4], 128
    $region29: #{tpu_custom_call.1} parent=1 // pred_fallthru
      _
    %324 = vsyncpa [#allocation3], 1
    %325 = vsyncpa [#allocation4], 1

</llo_original>
